<compile_context>
chip_gen: v5e
topology: v5e:2x2
jax: 0.10.0
libtpu: 0.0.40
codegen_flags: <defaults>
</compile_context>

<pallas_src>
import jax
import jax.numpy as jnp
from jax import lax
from jax.experimental import pallas as pl
from jax.experimental.pallas import tpu as pltpu  # noqa: F401  (TPU backend)

# ------------------------- problem sizes (small, synthetic) -------------------
B = 2            # batch
C = 4            # input channels
H = 16           # height
W = 16           # width
HW = H * W
F_BB = 32        # backbone.out_features
D = 32           # bottleneck_dim
NUM_CLASSES = 8  # num_classes
BN_EPS = 1e-5

LANES = 128      # lane-dense padded width for every dense layer / output
BP = 8           # batch padded to a full sublane tile (full vregs, unmasked vst)

# ------------------- packed weight-slab row offsets (bf16) --------------------
W2_OFF = 0                    # BN-folded bottleneck weight   rows [  0, 128)
W3_OFF = W2_OFF + LANES       # head weight                   rows [128, 256)
WBB_OFF = W3_OFF + LANES      # backbone linear weight        rows [256, 272)
BIAS_OFF = WBB_OFF + 16       # biases: row0=b_bb row1=b_bn' row2=b_head
R_TOTAL = BIAS_OFF + 16       # = 288 rows total


# ------------------------------- Pallas kernel --------------------------------
def image_classifier_kernel(x_ref, w_ref, out_ref):
    """x_ref  : [BP, C*HW]      f32  batch sublane-padded, lane-dense input slab
       w_ref  : [R_TOTAL, 128]  bf16 packed folded weights + biases (one DMA)
       out_ref: [BP, 256]       f32  lanes [0:128)=predictions, [128:256)=f
    """
    x = x_ref[...]                                                    # [BP, C*HW]

    b_bb = w_ref[BIAS_OFF + 0:BIAS_OFF + 1, :].astype(jnp.float32)    # [1,128]
    b_bn = w_ref[BIAS_OFF + 1:BIAS_OFF + 2, :].astype(jnp.float32)    # [1,128]
    b_hd = w_ref[BIAS_OFF + 2:BIAS_OFF + 3, :].astype(jnp.float32)    # [1,128]

    # backbone: global-average-pool per channel (cross-lane reduce, XLU) and the
    # Linear(C -> F_BB) expressed as C rank-1 updates (no replicated weight,
    # no K=1024 matmul), then ReLU.
    feat = jnp.zeros((BP, LANES), jnp.float32)
    for c in range(C):  # static Python loop, C = 4
        gap_c = jnp.sum(x[:, c * HW:(c + 1) * HW], axis=-1,
                        keepdims=True) * (1.0 / HW)                   # [BP, 1]
        w_row = w_ref[WBB_OFF + c:WBB_OFF + c + 1, :].astype(jnp.float32)  # [1,128]
        feat = feat + gap_c * w_row
    feat = jnp.maximum(feat + b_bb, 0.0)                              # [BP,128]

    # bottleneck: Linear with eval-mode BatchNorm folded in, then ReLU
    # (bf16 operands, f32 accumulation on the MXU)
    f = jnp.dot(feat.astype(jnp.bfloat16), w_ref[W2_OFF:W2_OFF + LANES, :],
                preferred_element_type=jnp.float32) + b_bn
    f = jnp.maximum(f, 0.0)                                           # [BP,128]

    # head: Linear
    pred = jnp.dot(f.astype(jnp.bfloat16), w_ref[W3_OFF:W3_OFF + LANES, :],
                   preferred_element_type=jnp.float32) + b_hd         # [BP,128]

    # single lane-dense output slab: [pred | f]
    out_ref[:, :LANES] = pred
    out_ref[:, LANES:] = f


# ------------------- one-time (call-invariant) weight packing ------------------
def pack_weights(params):
    """Eval-mode BatchNorm fold, lane padding to 128, bf16 cast and packing of all
    weights/biases into a single [R_TOTAL, 128] slab.  Call ONCE outside the
    per-call jit; the slab is constant across forward calls."""
    scale = params["bn_gamma"] * lax.rsqrt(params["bn_var"] + BN_EPS)         # [1, D]
    w2 = params["w_bn"] * scale                                               # [F_BB, D]
    b2 = (params["b_bn"] - params["bn_mean"]) * scale + params["bn_beta"]     # [1, D]

    def pad_to(a, rows, cols):
        return jnp.pad(a, ((0, rows - a.shape[0]), (0, cols - a.shape[1])))

    slab = jnp.concatenate([
        pad_to(w2, LANES, LANES),                 # rows [  0,128) bottleneck (BN folded)
        pad_to(params["w_head"], LANES, LANES),   # rows [128,256) head
        pad_to(params["w_bb"], 16, LANES),        # rows [256,272) backbone linear
        pad_to(params["b_bb"], 1, LANES),         # row  272       b_bb
        pad_to(b2, 1, LANES),                     # row  273       b_bn' (BN folded)
        pad_to(params["b_head"], 1, LANES),       # row  274       b_head
        jnp.zeros((13, LANES), jnp.float32),      # rows [275,288) padding
    ], axis=0).astype(jnp.bfloat16)
    assert slab.shape == (R_TOTAL, LANES)
    return slab


# ------------------------------- host wrapper ---------------------------------
def image_classifier_forward(x_nchw, w_slab):
    """x_nchw: [B, C, H, W] f32; w_slab: packed weights from pack_weights().
    Returns (predictions [B, NUM_CLASSES], f [B, D])."""
    b = x_nchw.shape[0]

    # lane-dense input slab, batch padded to a full (8,128) sublane tile
    x2d = x_nchw.reshape(b, C * HW).astype(jnp.float32)
    x2d = jnp.pad(x2d, ((0, BP - b), (0, 0)))                         # [BP, C*HW]

    out = pl.pallas_call(
        image_classifier_kernel,
        grid=(),  # single program; see TODO above re: batch grid axis on v7x
        in_specs=[
            pl.BlockSpec(x2d.shape, lambda: (0, 0)),
            pl.BlockSpec(w_slab.shape, lambda: (0, 0)),
        ],
        out_specs=pl.BlockSpec((BP, 2 * LANES), lambda: (0, 0)),
        out_shape=jax.ShapeDtypeStruct((BP, 2 * LANES), jnp.float32),
    )(x2d, w_slab)

    pred = out[:b, :NUM_CLASSES]
    f = out[:b, LANES:LANES + D]
    return pred, f


# --------------------------- deterministic parameters --------------------------
def make_params(key):
    ks = jax.random.split(key, 8)
    params = {
        # backbone (synthetic: GAP + Linear(C, F_BB) + ReLU)
        "w_bb": jax.random.normal(ks[0], (C, F_BB), jnp.float32) * 0.1,
        "b_bb": jax.random.normal(ks[1], (1, F_BB), jnp.float32) * 0.01,
        # bottleneck Linear(F_BB, D)
        "w_bn": jax.random.normal(ks[2], (F_BB, D), jnp.float32) * 0.1,
        "b_bn": jax.random.normal(ks[3], (1, D), jnp.float32) * 0.01,
        # BatchNorm1d(D) — eval mode running stats (deterministic, non-trivial)
        "bn_gamma": 1.0 + 0.1 * jax.random.normal(ks[4], (1, D), jnp.float32),
        "bn_beta": 0.1 * jax.random.normal(ks[5], (1, D), jnp.float32),
        "bn_mean": 0.05 * jax.random.normal(ks[6], (1, D), jnp.float32),
        "bn_var": jnp.abs(1.0 + 0.1 * jax.random.normal(ks[7], (1, D), jnp.float32)),
        # head Linear(D, NUM_CLASSES)
        "w_head": jax.random.normal(jax.random.fold_in(key, 100),
                                    (D, NUM_CLASSES), jnp.float32) * 0.1,
        "b_head": jax.random.normal(jax.random.fold_in(key, 101),
                                    (1, NUM_CLASSES), jnp.float32) * 0.01,
    }
    return params


# ---------------------------- pure-JAX reference -------------------------------
def reference_forward(x_nchw, p):
    gap = jnp.mean(x_nchw.reshape(B, C, H * W), axis=-1)
    feat = jnp.maximum(gap @ p["w_bb"] + p["b_bb"], 0.0)
    f_lin = feat @ p["w_bn"] + p["b_bn"]
    f_bn = (f_lin - p["bn_mean"]) * lax.rsqrt(p["bn_var"] + BN_EPS) * p["bn_gamma"] + p["bn_beta"]
    f = jnp.maximum(f_bn, 0.0)
    pred = f @ p["w_head"] + p["b_head"]
    return pred, f


if __name__ == "__main__":
    key = jax.random.PRNGKey(0)
    k_x, k_p = jax.random.split(key)
    x = jax.random.normal(k_x, (B, C, H, W), jnp.float32)
    params = make_params(k_p)

    # weight prep is call-invariant: done once, outside the per-call jit
    w_slab = jax.block_until_ready(pack_weights(params))

    fwd = jax.jit(image_classifier_forward)
    pred, f = jax.block_until_ready(fwd(x, w_slab))

    pred_ref, f_ref = reference_forward(x, params)
    assert pred.shape == (B, NUM_CLASSES) and f.shape == (B, D)
    # bf16 weights/activations (f32 accumulation) => looser tolerance than pure f32
    assert jnp.allclose(pred, pred_ref, atol=1e-2, rtol=1e-2)
    assert jnp.allclose(f, f_ref, atol=1e-2, rtol=1e-2)

    # TODO(synk): the real `backbone` is an arbitrary nn.Module (e.g. ResNet);
    # here it is a synthetic GAP+Linear+ReLU stand-in with matching interface.
    print("KERNEL_OK")
</pallas_src>

<mosaic_0001>
module attributes {stable_mosaic.version = 11 : i64} {
  func.func @image_classifier_kernel(%arg0: memref<8x1024xf32, #tpu.memory_space<vmem>>, %arg1: memref<288x128xbf16, #tpu.memory_space<vmem>>, %arg2: memref<8x256xf32, #tpu.memory_space<vmem>>) attributes {dimension_semantics = [], scalar_prefetch = 0 : i64, scratch_operands = 0 : i64, tpu.core_type = #tpu.core_type<tc>} {
    %c0 = arith.constant 0 : index
    %c0_0 = arith.constant 0 : index
    %0 = vector.load %arg0[%c0, %c0_0] : memref<8x1024xf32, #tpu.memory_space<vmem>>, vector<8x1024xf32>
    %c272 = arith.constant 272 : index
    %c0_1 = arith.constant 0 : index
    %1 = vector.load %arg1[%c272, %c0_1] : memref<288x128xbf16, #tpu.memory_space<vmem>>, vector<1x128xbf16>
    %2 = arith.extf %1 : vector<1x128xbf16> to vector<1x128xf32>
    %c273 = arith.constant 273 : index
    %c0_2 = arith.constant 0 : index
    %3 = vector.load %arg1[%c273, %c0_2] : memref<288x128xbf16, #tpu.memory_space<vmem>>, vector<1x128xbf16>
    %4 = arith.extf %3 : vector<1x128xbf16> to vector<1x128xf32>
    %c274 = arith.constant 274 : index
    %c0_3 = arith.constant 0 : index
    %5 = vector.load %arg1[%c274, %c0_3] : memref<288x128xbf16, #tpu.memory_space<vmem>>, vector<1x128xbf16>
    %6 = arith.extf %5 : vector<1x128xbf16> to vector<1x128xf32>
    %cst = arith.constant 0.000000e+00 : f32
    %7 = vector.broadcast %cst : f32 to vector<8x128xf32>
    %8 = vector.extract_strided_slice %0 {offsets = [0, 0], sizes = [8, 256], strides = [1, 1]} : vector<8x1024xf32> to vector<8x256xf32>
    %cst_4 = arith.constant dense<0.000000e+00> : vector<8xf32>
    %9 = vector.multi_reduction <add>, %8, %cst_4 [1] : vector<8x256xf32> to vector<8xf32>
    %10 = vector.shape_cast %9 : vector<8xf32> to vector<8x1xf32>
    %cst_5 = arith.constant 3.906250e-03 : f32
    %11 = vector.broadcast %cst_5 : f32 to vector<8x1xf32>
    %12 = arith.mulf %10, %11 : vector<8x1xf32>
    %c256 = arith.constant 256 : index
    %c0_6 = arith.constant 0 : index
    %13 = vector.load %arg1[%c256, %c0_6] : memref<288x128xbf16, #tpu.memory_space<vmem>>, vector<1x128xbf16>
    %14 = arith.extf %13 : vector<1x128xbf16> to vector<1x128xf32>
    %15 = vector.broadcast %12 : vector<8x1xf32> to vector<8x128xf32>
    %16 = vector.broadcast %14 : vector<1x128xf32> to vector<8x128xf32>
    %17 = arith.mulf %15, %16 : vector<8x128xf32>
    %18 = arith.addf %7, %17 : vector<8x128xf32>
    %19 = vector.extract_strided_slice %0 {offsets = [0, 256], sizes = [8, 256], strides = [1, 1]} : vector<8x1024xf32> to vector<8x256xf32>
    %cst_7 = arith.constant dense<0.000000e+00> : vector<8xf32>
    %20 = vector.multi_reduction <add>, %19, %cst_7 [1] : vector<8x256xf32> to vector<8xf32>
    %21 = vector.shape_cast %20 : vector<8xf32> to vector<8x1xf32>
    %cst_8 = arith.constant 3.906250e-03 : f32
    %22 = vector.broadcast %cst_8 : f32 to vector<8x1xf32>
    %23 = arith.mulf %21, %22 : vector<8x1xf32>
    %c257 = arith.constant 257 : index
    %c0_9 = arith.constant 0 : index
    %24 = vector.load %arg1[%c257, %c0_9] : memref<288x128xbf16, #tpu.memory_space<vmem>>, vector<1x128xbf16>
    %25 = arith.extf %24 : vector<1x128xbf16> to vector<1x128xf32>
    %26 = vector.broadcast %23 : vector<8x1xf32> to vector<8x128xf32>
    %27 = vector.broadcast %25 : vector<1x128xf32> to vector<8x128xf32>
    %28 = arith.mulf %26, %27 : vector<8x128xf32>
    %29 = arith.addf %18, %28 : vector<8x128xf32>
    %30 = vector.extract_strided_slice %0 {offsets = [0, 512], sizes = [8, 256], strides = [1, 1]} : vector<8x1024xf32> to vector<8x256xf32>
    %cst_10 = arith.constant dense<0.000000e+00> : vector<8xf32>
    %31 = vector.multi_reduction <add>, %30, %cst_10 [1] : vector<8x256xf32> to vector<8xf32>
    %32 = vector.shape_cast %31 : vector<8xf32> to vector<8x1xf32>
    %cst_11 = arith.constant 3.906250e-03 : f32
    %33 = vector.broadcast %cst_11 : f32 to vector<8x1xf32>
    %34 = arith.mulf %32, %33 : vector<8x1xf32>
    %c258 = arith.constant 258 : index
    %c0_12 = arith.constant 0 : index
    %35 = vector.load %arg1[%c258, %c0_12] : memref<288x128xbf16, #tpu.memory_space<vmem>>, vector<1x128xbf16>
    %36 = arith.extf %35 : vector<1x128xbf16> to vector<1x128xf32>
    %37 = vector.broadcast %34 : vector<8x1xf32> to vector<8x128xf32>
    %38 = vector.broadcast %36 : vector<1x128xf32> to vector<8x128xf32>
    %39 = arith.mulf %37, %38 : vector<8x128xf32>
    %40 = arith.addf %29, %39 : vector<8x128xf32>
    %41 = vector.extract_strided_slice %0 {offsets = [0, 768], sizes = [8, 256], strides = [1, 1]} : vector<8x1024xf32> to vector<8x256xf32>
    %cst_13 = arith.constant dense<0.000000e+00> : vector<8xf32>
    %42 = vector.multi_reduction <add>, %41, %cst_13 [1] : vector<8x256xf32> to vector<8xf32>
    %43 = vector.shape_cast %42 : vector<8xf32> to vector<8x1xf32>
    %cst_14 = arith.constant 3.906250e-03 : f32
    %44 = vector.broadcast %cst_14 : f32 to vector<8x1xf32>
    %45 = arith.mulf %43, %44 : vector<8x1xf32>
    %c259 = arith.constant 259 : index
    %c0_15 = arith.constant 0 : index
    %46 = vector.load %arg1[%c259, %c0_15] : memref<288x128xbf16, #tpu.memory_space<vmem>>, vector<1x128xbf16>
    %47 = arith.extf %46 : vector<1x128xbf16> to vector<1x128xf32>
    %48 = vector.broadcast %45 : vector<8x1xf32> to vector<8x128xf32>
    %49 = vector.broadcast %47 : vector<1x128xf32> to vector<8x128xf32>
    %50 = arith.mulf %48, %49 : vector<8x128xf32>
    %51 = arith.addf %40, %50 : vector<8x128xf32>
    %52 = vector.broadcast %2 : vector<1x128xf32> to vector<8x128xf32>
    %53 = arith.addf %51, %52 : vector<8x128xf32>
    %cst_16 = arith.constant 0.000000e+00 : f32
    %54 = vector.broadcast %cst_16 : f32 to vector<8x128xf32>
    %55 = arith.maximumf %53, %54 : vector<8x128xf32>
    %56 = arith.truncf %55 : vector<8x128xf32> to vector<8x128xbf16>
    %c0_17 = arith.constant 0 : index
    %c0_18 = arith.constant 0 : index
    %57 = vector.load %arg1[%c0_17, %c0_18] : memref<288x128xbf16, #tpu.memory_space<vmem>>, vector<128x128xbf16>
    %cst_19 = arith.constant dense<0.000000e+00> : vector<8x128xf32>
    %58 = tpu.matmul %56, %57, %cst_19 {dimension_numbers = #tpu.dot_dimension_numbers<[1], [0], [0], [1], [0, 0, 1, 1], [], []>} : vector<8x128xbf16>, vector<128x128xbf16>, vector<8x128xf32> -> vector<8x128xf32>
    %59 = vector.broadcast %4 : vector<1x128xf32> to vector<8x128xf32>
    %60 = arith.addf %58, %59 : vector<8x128xf32>
    %cst_20 = arith.constant 0.000000e+00 : f32
    %61 = vector.broadcast %cst_20 : f32 to vector<8x128xf32>
    %62 = arith.maximumf %60, %61 : vector<8x128xf32>
    %63 = arith.truncf %62 : vector<8x128xf32> to vector<8x128xbf16>
    %c128 = arith.constant 128 : index
    %c0_21 = arith.constant 0 : index
    %64 = vector.load %arg1[%c128, %c0_21] : memref<288x128xbf16, #tpu.memory_space<vmem>>, vector<128x128xbf16>
    %cst_22 = arith.constant dense<0.000000e+00> : vector<8x128xf32>
    %65 = tpu.matmul %63, %64, %cst_22 {dimension_numbers = #tpu.dot_dimension_numbers<[1], [0], [0], [1], [0, 0, 1, 1], [], []>} : vector<8x128xbf16>, vector<128x128xbf16>, vector<8x128xf32> -> vector<8x128xf32>
    %66 = vector.broadcast %6 : vector<1x128xf32> to vector<8x128xf32>
    %67 = arith.addf %65, %66 : vector<8x128xf32>
    %c0_23 = arith.constant 0 : index
    %c0_24 = arith.constant 0 : index
    %68 = vector.load %arg2[%c0_23, %c0_24] : memref<8x256xf32, #tpu.memory_space<vmem>>, vector<8x128xf32>
    tpu.vector_store %arg2[%c0_23, %c0_24], %67 {strides = array<i32>} : memref<8x256xf32, #tpu.memory_space<vmem>>, vector<8x128xf32>,
    %c0_25 = arith.constant 0 : index
    %c128_26 = arith.constant 128 : index
    %69 = vector.load %arg2[%c0_25, %c128_26] : memref<8x256xf32, #tpu.memory_space<vmem>>, vector<8x128xf32>
    tpu.vector_store %arg2[%c0_25, %c128_26], %62 {strides = array<i32>} : memref<8x256xf32, #tpu.memory_space<vmem>>, vector<8x128xf32>,
    return
  }
}

</mosaic_0001>

<llo_original>
// kernel: image_classifier_forward.1
$region0: #{image_classifier_forward.1}
  #allocation0 [shape = 'u32[]', space=smem, size = 0x4, offset = 0x4, fixed_abs, tag = 'smem constant byte address 0x4 - core index']
  #allocation1 [shape = 'u32[72,128]{1,0:T(1,128)}', space=vmem, size = 0x9000, scoped, tag = 'internal scratch']
  %s0 = inlined_call_operand.vmem [shape: f32[8,1024], index: 0, kind: input, shape index: {}]
  %s1 = inlined_call_operand.vmem [shape: bf16[288,128], index: 1, kind: input, shape index: {}]
  %s2 = inlined_call_operand.vmem [shape: f32[8,256], index: 2, kind: output, shape index: {}]
  %s3 = sld [smem:[#allocation0]]
  $region18: #{image_classifier_forward.1} parent=0
    _
  %s5 = ssub.s32 1, %s3
  %s6 = scalar_select 0, %s5, %s3
  // Predicated region
  $region2: #{image_classifier_forward.1} parent=0 // pred_check
    _
  $region3: #{image_classifier_forward.1} parent=0 // pred_check_branch
    %8 = sbr.rel (0) target = $region5
  $region4: #{image_classifier_forward.1} parent=0 // pred_region
    _
  $region5: #{image_classifier_forward.1} parent=0 // pred_fallthru
    _
  // Predicated region
  $region6: #{image_classifier_forward.1} parent=0 // pred_check
    _
  $region7: #{image_classifier_forward.1} parent=0 // pred_check_branch
    %10 = sbr.rel (0) target = $region9
  $region8: #{image_classifier_forward.1} parent=0 // pred_region
    _
  $region9: #{image_classifier_forward.1} parent=0 // pred_fallthru
    _
  %v11 = vld [vmem:[%s0] sm:$0xff]
  %v12 = vld [vmem:[%s0 + $0x8] sm:$0xff]
  %v13 = vld [vmem:[%s0 + $0x10] sm:$0xff]
  %v14 = vld [vmem:[%s0 + $0x18] sm:$0xff]
  %v15 = vld [vmem:[%s0 + $0x20] sm:$0xff]
  %v16 = vld [vmem:[%s0 + $0x28] sm:$0xff]
  %v17 = vld [vmem:[%s0 + $0x30] sm:$0xff]
  %v18 = vld [vmem:[%s0 + $0x38] sm:$0xff]
  %v19 = vld [vmem:[%s1 + $0x88] sm:$0x1]
  %v20 = vunpack.c.l.bf16 %v19
  %v21 = vld [vmem:[%s1 + $0x88] sm:$0x2]
  %v22 = vunpack.c.l.bf16 %v21
  %v23 = vadd.f32 %v11, %v12
  %24 = vadd.xlane.f32.xlu0 %v23
  %v25 = vpop.xlane.xlu0 %24
  %v26 = vmul.f32 %v25, 0.00390625
  %v27 = vld [vmem:[%s1 + $0x80] sm:$0x1]
  %v28 = vunpack.c.l.bf16 %v27
  %v29 = vperm.slane %v28, 0
  %v30 = vmul.f32 %v26, %v29
  %v31 = vadd.f32 %v30, 0.0
  %v32 = vadd.f32 %v13, %v14
  %33 = vadd.xlane.f32.xlu0 %v32
  %v34 = vpop.xlane.xlu0 %33
  %v35 = vmul.f32 %v34, 0.00390625
  %v36 = vperm.slane %v28, 1
  %v37 = vmul.f32 %v35, %v36
  %v38 = vadd.f32 %v31, %v37
  %v39 = vadd.f32 %v15, %v16
  %40 = vadd.xlane.f32.xlu0 %v39
  %v41 = vpop.xlane.xlu0 %40
  %v42 = vmul.f32 %v41, 0.00390625
  %v43 = vld [vmem:[%s1 + $0x80] sm:$0x2]
  %v44 = vunpack.c.l.bf16 %v43
  %v45 = vperm.slane %v44, 2
  %v46 = vmul.f32 %v42, %v45
  %v47 = vadd.f32 %v38, %v46
  %v48 = vadd.f32 %v17, %v18
  %49 = vadd.xlane.f32.xlu0 %v48
  %v50 = vpop.xlane.xlu0 %49
  %v51 = vmul.f32 %v50, 0.00390625
  %v52 = vperm.slane %v44, 3
  %v53 = vmul.f32 %v51, %v52
  %v54 = vadd.f32 %v47, %v53
  %v55 = vperm.slane %v20, 0
  %v56 = vadd.f32 %v54, %v55
  %v57 = vmax.f32 %v56, 0.0
  %v58 = vpack.c.bf16 %v57, %v57
  %v59 = vld [vmem:[%s1] sm:$0xf]
  %v60 = vld [vmem:[%s1 + $0x4] sm:$0xf]
  %v61 = vld [vmem:[%s1 + $0x8] sm:$0xf]
  %v62 = vld [vmem:[%s1 + $0xc] sm:$0xf]
  %v63 = vld [vmem:[%s1 + $0x10] sm:$0xf]
  %v64 = vld [vmem:[%s1 + $0x14] sm:$0xf]
  %v65 = vld [vmem:[%s1 + $0x18] sm:$0xf]
  %v66 = vld [vmem:[%s1 + $0x1c] sm:$0xf]
  %v67 = vld [vmem:[%s1 + $0x20] sm:$0xf]
  %v68 = vld [vmem:[%s1 + $0x24] sm:$0xf]
  %v69 = vld [vmem:[%s1 + $0x28] sm:$0xf]
  %v70 = vld [vmem:[%s1 + $0x2c] sm:$0xf]
  %v71 = vld [vmem:[%s1 + $0x30] sm:$0xf]
  %v72 = vld [vmem:[%s1 + $0x34] sm:$0xf]
  %v73 = vld [vmem:[%s1 + $0x38] sm:$0xf]
  %v74 = vld [vmem:[%s1 + $0x3c] sm:$0xf]
  %v75 = vperm.slane %v20, 1
  %v92 = vunpack.c.l.b16 %v59
  %v93 = vunpack.c.l.b16 %v60
  %v94 = vunpack.c.l.b16 %v61
  %v95 = vunpack.c.l.b16 %v62
  %v96 = vunpack.c.l.b16 %v63
  %v97 = vunpack.c.l.b16 %v64
  %v98 = vunpack.c.l.b16 %v65
  %v99 = vunpack.c.l.b16 %v66
  %v100 = vunpack.c.l.b16 %v67
  %v101 = vunpack.c.l.b16 %v68
  %v102 = vunpack.c.l.b16 %v69
  %v103 = vunpack.c.l.b16 %v70
  %v104 = vunpack.c.l.b16 %v71
  %v105 = vunpack.c.l.b16 %v72
  %v106 = vunpack.c.l.b16 %v73
  %v107 = vunpack.c.l.b16 %v74
  %v108 = vpack.c.b16 %v93, %v92
  %v109 = vpack.c.b16 %v95, %v94
  %v110 = vpack.c.b16 %v97, %v96
  %v111 = vpack.c.b16 %v99, %v98
  %v112 = vpack.c.b16 %v101, %v100
  %v113 = vpack.c.b16 %v103, %v102
  %v114 = vpack.c.b16 %v105, %v104
  %v115 = vpack.c.b16 %v107, %v106
  %124 = vmatpush.bf16.msra.mxu0 %v115
  %125 = vmatpush.bf16.msra.mxu0 %v114
  %126 = vmatpush.bf16.msra.mxu0 %v113
  %127 = vmatpush.bf16.msra.mxu0 %v112
  %128 = vmatpush.bf16.msra.mxu0 %v111
  %129 = vmatpush.bf16.msra.mxu0 %v110
  %130 = vmatpush.bf16.msra.mxu0 %v109
  %131 = vmatpush.bf16.msra.mxu0 %v108
  %132 = vmatmul.bf16.gmra.mxu0 %v58
  %v133 = vpop.f32.mrf.mxu0
  %v134 = vadd.f32 %v75, %v133
  %v135 = vpop.f32.mrf.mxu0
  %136 = vdwg.mxu0
  %v137 = vmax.f32 %v134, 0.0
  %v138 = vpack.c.bf16 %v137, %v137
  %v139 = vld [vmem:[%s1 + $0x40] sm:$0xf]
  %v140 = vld [vmem:[%s1 + $0x44] sm:$0xf]
  %v141 = vld [vmem:[%s1 + $0x48] sm:$0xf]
  %v142 = vld [vmem:[%s1 + $0x4c] sm:$0xf]
  %v143 = vld [vmem:[%s1 + $0x50] sm:$0xf]
  %v144 = vld [vmem:[%s1 + $0x54] sm:$0xf]
  %v145 = vld [vmem:[%s1 + $0x58] sm:$0xf]
  %v146 = vld [vmem:[%s1 + $0x5c] sm:$0xf]
  %v147 = vld [vmem:[%s1 + $0x60] sm:$0xf]
  %v148 = vld [vmem:[%s1 + $0x64] sm:$0xf]
  %v149 = vld [vmem:[%s1 + $0x68] sm:$0xf]
  %v150 = vld [vmem:[%s1 + $0x6c] sm:$0xf]
  %v151 = vld [vmem:[%s1 + $0x70] sm:$0xf]
  %v152 = vld [vmem:[%s1 + $0x74] sm:$0xf]
  %v153 = vld [vmem:[%s1 + $0x78] sm:$0xf]
  %v154 = vld [vmem:[%s1 + $0x7c] sm:$0xf]
  %v155 = vperm.slane %v22, 2
  %v172 = vunpack.c.l.b16 %v139
  %v173 = vunpack.c.l.b16 %v140
  %v174 = vunpack.c.l.b16 %v141
  %v175 = vunpack.c.l.b16 %v142
  %v176 = vunpack.c.l.b16 %v143
  %v177 = vunpack.c.l.b16 %v144
  %v178 = vunpack.c.l.b16 %v145
  %v179 = vunpack.c.l.b16 %v146
  %v180 = vunpack.c.l.b16 %v147
  %v181 = vunpack.c.l.b16 %v148
  %v182 = vunpack.c.l.b16 %v149
  %v183 = vunpack.c.l.b16 %v150
  %v184 = vunpack.c.l.b16 %v151
  %v185 = vunpack.c.l.b16 %v152
  %v186 = vunpack.c.l.b16 %v153
  %v187 = vunpack.c.l.b16 %v154
  %v188 = vpack.c.b16 %v173, %v172
  %v189 = vpack.c.b16 %v175, %v174
  %v190 = vpack.c.b16 %v177, %v176
  %v191 = vpack.c.b16 %v179, %v178
  %v192 = vpack.c.b16 %v181, %v180
  %v193 = vpack.c.b16 %v183, %v182
  %v194 = vpack.c.b16 %v185, %v184
  %v195 = vpack.c.b16 %v187, %v186
  %204 = vmatpush.bf16.msra.mxu0 %v195
  %205 = vmatpush.bf16.msra.mxu0 %v194
  %206 = vmatpush.bf16.msra.mxu0 %v193
  %207 = vmatpush.bf16.msra.mxu0 %v192
  %208 = vmatpush.bf16.msra.mxu0 %v191
  %209 = vmatpush.bf16.msra.mxu0 %v190
  %210 = vmatpush.bf16.msra.mxu0 %v189
  %211 = vmatpush.bf16.msra.mxu0 %v188
  %212 = vmatmul.bf16.gmra.mxu0 %v138
  %v213 = vpop.f32.mrf.mxu0
  %v214 = vadd.f32 %v155, %v213
  %v215 = vpop.f32.mrf.mxu0
  %216 = vdwg.mxu0
  %217 = vst [vmem:[%s2] sm:$0xff] %v214
  %218 = vst [vmem:[%s2 + $0x8] sm:$0xff] %v137
  // Predicated region
  $region10: #{image_classifier_forward.1} parent=0 // pred_check
    _
  $region11: #{image_classifier_forward.1} parent=0 // pred_check_branch
    %220 = sbr.rel (0) target = $region13
  $region12: #{image_classifier_forward.1} parent=0 // pred_region
    _
  $region13: #{image_classifier_forward.1} parent=0 // pred_fallthru
    _
  // Predicated region
  $region14: #{image_classifier_forward.1} parent=0 // pred_check
    _
  $region15: #{image_classifier_forward.1} parent=0 // pred_check_branch
    %222 = sbr.rel (0) target = $region17
  $region16: #{image_classifier_forward.1} parent=0 // pred_region
    _
  $region17: #{image_classifier_forward.1} parent=0 // pred_fallthru
    _

</llo_original>
